<compile_context>
chip_gen: v5e
topology: v5e:2x2
jax: 0.10.0
libtpu: 0.0.40
codegen_flags: <defaults>
</compile_context>

<pallas_src>
from math import sqrt

import jax
import jax.numpy as jnp
from jax import lax
from jax.experimental import pallas as pl
from jax.experimental.pallas import tpu as pltpu


# -----------------------------------------------------------------------------
# Fused kernel (one batch tile per grid step, everything in flat lane-dense
# layouts -> only 2D matmuls + elementwise VPU/EUP ops, zero reshapes).
# -----------------------------------------------------------------------------
def _fused_kernel(xf_ref, w1_ref, b1_ref, ssel_ref, bsel_ref,
                  w2_ref, b2_ref, wlin_ref, blin_ref, out_ref):
    # conv1 (3x3, pad=1) with from_rgb and the constant mean-std channel
    # folded in: ONE MXU matmul, result already flat position-major (bt, 16F).
    h1 = jnp.dot(xf_ref[...], w1_ref[...],
                 preferred_element_type=jnp.float32) + b1_ref[...]

    # PixelNorm over channels (per position == per F-lane chunk), kept on the
    # flat layout: chunk mean-of-squares and chunk broadcast-back are two tiny
    # selector matmuls (MXU has slack) + rsqrt on the EUP slot.
    msq = jnp.dot(h1 * h1, ssel_ref[...], preferred_element_type=jnp.float32)
    rinv = lax.rsqrt(msq + 1e-8)
    h1 = h1 * jnp.dot(rinv, bsel_ref[...], preferred_element_type=jnp.float32)
    h1 = jnp.where(h1 >= 0, h1, 0.2 * h1)                 # LeakyReLU(0.2)

    # conv2 (4x4 valid on the 4x4 map) == one matmul over (position, channel).
    h2 = jnp.dot(h1, w2_ref[...],
                 preferred_element_type=jnp.float32) + b2_ref[...]
    h2 = h2 * lax.rsqrt(jnp.mean(h2 * h2, axis=-1, keepdims=True) + 1e-8)
    h2 = jnp.where(h2 >= 0, h2, 0.2 * h2)

    # EqualLinear(F, 1): VPU multiply + lane reduction (avoid an N=1 matmul).
    out_ref[...] = (jnp.sum(h2 * wlin_ref[...], axis=-1, keepdims=True)
                    + blin_ref[...])


def init_params(key, feat_dim=32, num_classes=10):
    """Synthetic parameters matching the PyTorch __init__ (step=0 subset):
    weights ~ N(0,1), biases zero (exactly like the module's init)."""
    F = feat_dim
    ks = jax.random.split(key, 5)
    return dict(
        emb6=jax.random.normal(ks[0], (num_classes, 16), jnp.float32),
        w_rgb=jax.random.normal(ks[1], (F, 4, 1, 1), jnp.float32),   # from_rgb[6]
        b_rgb=jnp.zeros((F,), jnp.float32),
        w1=jax.random.normal(ks[2], (F, F + 1, 3, 3), jnp.float32),  # conv1
        b1=jnp.zeros((F,), jnp.float32),
        w2=jax.random.normal(ks[3], (F, F, 4, 4), jnp.float32),      # conv2
        b2=jnp.zeros((F,), jnp.float32),
        w_lin=jax.random.normal(ks[4], (1, F), jnp.float32),         # EqualLinear
        b_lin=jnp.zeros((1,), jnp.float32),
    )


@jax.jit
def conditional_discriminator_wgangp_step0(x_nchw, label, params):
    """Forward pass (step=0, alpha=-1). x_nchw: (B, 3, 4, 4) float32."""
    B = x_nchw.shape[0]
    F = params["w_rgb"].shape[0]
    NF = 16 * F

    # ---------------- jitted glue: layout + EqualLR + weight folding --------
    emb = params["emb6"][label].reshape(B, 4, 4, 1)
    x_nhwc = jnp.transpose(x_nchw, (0, 2, 3, 1))
    x_cat = jnp.concatenate([x_nhwc, emb], axis=-1)              # (B, 4, 4, 4)
    xf = x_cat.reshape(B, 64)                                    # flat q*4 + c

    # EqualLR: weight * sqrt(2 / fan_in); biases are NOT rescaled.
    wrgbs = params["w_rgb"].reshape(F, 4) * sqrt(2.0 / 4.0)
    w1s = params["w1"] * sqrt(2.0 / ((F + 1) * 9))
    w2s = params["w2"] * sqrt(2.0 / (F * 16))
    wlins = params["w_lin"] * sqrt(2.0 / F)
    brgb, b1, b2, blin = (params["b_rgb"], params["b1"],
                          params["b2"], params["b_lin"])

    # Minibatch stddev (whole-batch statistic of from_rgb(x)); tiny reduction
    # kept in the jitted prologue so the Pallas grid stays batch-parallel.
    h0 = jnp.einsum("byxc,fc->byxf", x_cat, wrgbs) + brgb
    var = jnp.mean((h0 - jnp.mean(h0, axis=0, keepdims=True)) ** 2, axis=0)
    mean_std = jnp.mean(jnp.sqrt(var + 1e-8))

    # "Unrolled conv" weight for conv1 with from_rgb folded in:
    #   W1big[q*4+c, p*F+o] = [q is the (ky,kx)-tap of p] *
    #                          sum_f wrgbs[f,c] * w1s[o,f,ky,kx]
    pos = jnp.arange(16)
    pyv, pxv = pos // 4, pos % 4
    ky = pyv[None, :] - pyv[:, None] + 1                         # (p, q)
    kx = pxv[None, :] - pxv[:, None] + 1
    valid = ((ky >= 0) & (ky < 3) & (kx >= 0) & (kx < 3)).astype(jnp.float32)
    A = jnp.einsum("fc,ofyx->yxco", wrgbs, w1s[:, :F])           # (3,3,4,F)
    W1pq = A[jnp.clip(ky, 0, 2), jnp.clip(kx, 0, 2)] * valid[:, :, None, None]
    W1big = jnp.transpose(W1pq, (1, 2, 0, 3)).reshape(64, NF)    # (64, 16F)

    # Per-output-position bias row: from_rgb bias and the constant mean-std
    # channel pushed through conv1's valid taps, plus conv1's own bias.
    kyg, kxg = jnp.meshgrid(jnp.arange(3), jnp.arange(3), indexing="ij")
    iy = pyv[:, None, None] + kyg[None] - 1
    ix = pxv[:, None, None] + kxg[None] - 1
    vtaps = ((iy >= 0) & (iy < 4) & (ix >= 0) & (ix < 4)).astype(jnp.float32)
    t_rgb = jnp.einsum("f,ofyx->yxo", brgb, w1s[:, :F])          # (3,3,F)
    t_std = jnp.transpose(w1s[:, F], (1, 2, 0))                  # (3,3,F)
    bias1 = (jnp.einsum("pyx,yxo->po", vtaps, t_rgb + mean_std * t_std)
             + b1[None, :]).reshape(1, NF)

    # PixelNorm chunk-sum / chunk-broadcast selectors (per-position over F).
    eye16 = jnp.eye(16, dtype=jnp.float32)
    ssel = jnp.kron(eye16, jnp.ones((F, 1), jnp.float32)) / F    # (16F, 16)
    bsel = jnp.kron(eye16, jnp.ones((1, F), jnp.float32))        # (16, 16F)

    # conv2 flattened over (position, channel), position-major == h1 layout.
    w2flat = jnp.transpose(w2s, (2, 3, 1, 0)).reshape(NF, F)     # (16F, F)

    # ---------------- batch tiling: bounded tile, padded remainder ----------
    bt = 128 if B > 128 else max(8, -(-B // 8) * 8)
    B_pad = -(-B // bt) * bt
    xf = jnp.pad(xf, ((0, B_pad - B), (0, 0)))
    grid = (B_pad // bt,)

    out = pl.pallas_call(
        _fused_kernel,
        out_shape=jax.ShapeDtypeStruct((B_pad, 1), jnp.float32),
        grid=grid,
        in_specs=[
            pl.BlockSpec((bt, 64), lambda i: (i, 0)),     # per-tile input
            pl.BlockSpec((64, NF), lambda i: (0, 0)),     # resident weights:
            pl.BlockSpec((1, NF), lambda i: (0, 0)),      #   conv1 bias row
            pl.BlockSpec((NF, 16), lambda i: (0, 0)),     #   chunk-sum sel
            pl.BlockSpec((16, NF), lambda i: (0, 0)),     #   chunk-bcast sel
            pl.BlockSpec((NF, F), lambda i: (0, 0)),      #   conv2
            pl.BlockSpec((1, F), lambda i: (0, 0)),       #   conv2 bias
            pl.BlockSpec((1, F), lambda i: (0, 0)),       #   linear weight
            pl.BlockSpec((1, 1), lambda i: (0, 0)),       #   linear bias
        ],
        out_specs=pl.BlockSpec((bt, 1), lambda i: (i, 0)),
        compiler_params=pltpu.CompilerParams(
            dimension_semantics=("parallel",),
            vmem_limit_bytes=32 * 1024 * 1024),
    )(xf, W1big, bias1, ssel, bsel, w2flat,
      b2.reshape(1, F), wlins.reshape(1, F), blin.reshape(1, 1))

    return out[:B]


def _reference(x_nchw, label, params):
    """Pure-JAX NCHW reference mirroring the PyTorch forward (step=0)."""
    B = x_nchw.shape[0]
    F = params["w_rgb"].shape[0]
    dn = ("NCHW", "OIHW", "NCHW")
    emb = params["emb6"][label].reshape(B, 1, 4, 4)
    xin = jnp.concatenate([x_nchw, emb], axis=1)
    h = lax.conv_general_dilated(xin, params["w_rgb"] * sqrt(2.0 / 4.0),
                                 (1, 1), "VALID", dimension_numbers=dn)
    h = h + params["b_rgb"].reshape(1, F, 1, 1)
    var = jnp.mean((h - h.mean(0, keepdims=True)) ** 2, axis=0)
    mean_std = jnp.mean(jnp.sqrt(var + 1e-8))
    h = jnp.concatenate([h, jnp.full((B, 1, 4, 4), mean_std, h.dtype)], axis=1)
    h = lax.conv_general_dilated(h, params["w1"] * sqrt(2.0 / ((F + 1) * 9)),
                                 (1, 1), ((1, 1), (1, 1)), dimension_numbers=dn)
    h = h + params["b1"].reshape(1, F, 1, 1)
    h = h / jnp.sqrt(jnp.mean(h * h, axis=1, keepdims=True) + 1e-8)
    h = jnp.where(h >= 0, h, 0.2 * h)
    h = lax.conv_general_dilated(h, params["w2"] * sqrt(2.0 / (F * 16)),
                                 (1, 1), "VALID", dimension_numbers=dn)
    h = h + params["b2"].reshape(1, F, 1, 1)
    h = h / jnp.sqrt(jnp.mean(h * h, axis=1, keepdims=True) + 1e-8)
    h = jnp.where(h >= 0, h, 0.2 * h)
    h = h.reshape(B, F)
    return h @ (params["w_lin"] * sqrt(2.0 / F)).T + params["b_lin"]


if __name__ == "__main__":
    key = jax.random.PRNGKey(0)
    kp, kx, kl = jax.random.split(key, 3)

    feat_dim, num_classes, batch = 32, 10, 2
    params = init_params(kp, feat_dim=feat_dim, num_classes=num_classes)

    # step=0 => input resolution is 4x4 (embeddings[6] produces a 4x4 plane)
    x = jax.random.normal(kx, (batch, 3, 4, 4), jnp.float32)
    label = jax.random.randint(kl, (batch,), 0, num_classes)

    out = conditional_discriminator_wgangp_step0(x, label, params)
    out = jax.block_until_ready(out)

    ref = _reference(x, label, params)
    assert out.shape == (batch, 1)
    # 2e-3 tolerance: MXU default-precision f32 matmuls (kernel) vs XLA convs
    # (reference) accumulate in different orders/precisions.
    assert jnp.allclose(out, ref, atol=2e-3, rtol=2e-3), (out, ref)
    print("KERNEL_OK")
</pallas_src>

<mosaic_0001>
module attributes {stable_mosaic.version = 11 : i64} {
  func.func @_fused_kernel(%arg0: i32, %arg1: memref<8x64xf32, #tpu.memory_space<vmem>>, %arg2: memref<64x512xf32, #tpu.memory_space<vmem>>, %arg3: memref<1x512xf32, #tpu.memory_space<vmem>>, %arg4: memref<512x16xf32, #tpu.memory_space<vmem>>, %arg5: memref<16x512xf32, #tpu.memory_space<vmem>>, %arg6: memref<512x32xf32, #tpu.memory_space<vmem>>, %arg7: memref<1x32xf32, #tpu.memory_space<vmem>>, %arg8: memref<1x32xf32, #tpu.memory_space<vmem>>, %arg9: memref<1x1xf32, #tpu.memory_space<vmem>>, %arg10: memref<8x1xf32, #tpu.memory_space<vmem>>) attributes {dimension_semantics = [#tpu.dimension_semantics<parallel>], iteration_bounds = array<i64: 1>, scalar_prefetch = 0 : i64, scratch_operands = 0 : i64, tpu.core_type = #tpu.core_type<tc>, window_params = [{transform_indices = @transform_0, window_bounds = array<i64: 8, 64>}, {pipeline_mode = #tpu.pipeline_mode<synchronous>, transform_indices = @transform_1, window_bounds = array<i64: 64, 512>}, {pipeline_mode = #tpu.pipeline_mode<synchronous>, transform_indices = @transform_2, window_bounds = array<i64: 1, 512>}, {pipeline_mode = #tpu.pipeline_mode<synchronous>, transform_indices = @transform_3, window_bounds = array<i64: 512, 16>}, {pipeline_mode = #tpu.pipeline_mode<synchronous>, transform_indices = @transform_4, window_bounds = array<i64: 16, 512>}, {pipeline_mode = #tpu.pipeline_mode<synchronous>, transform_indices = @transform_5, window_bounds = array<i64: 512, 32>}, {pipeline_mode = #tpu.pipeline_mode<synchronous>, transform_indices = @transform_6, window_bounds = array<i64: 1, 32>}, {pipeline_mode = #tpu.pipeline_mode<synchronous>, transform_indices = @transform_7, window_bounds = array<i64: 1, 32>}, {pipeline_mode = #tpu.pipeline_mode<synchronous>, transform_indices = @transform_8, window_bounds = array<i64: 1, 1>}, {transform_indices = @transform_9, window_bounds = array<i64: 8, 1>}]} {
    %c0 = arith.constant 0 : index
    %c0_0 = arith.constant 0 : index
    %0 = vector.load %arg1[%c0, %c0_0] : memref<8x64xf32, #tpu.memory_space<vmem>>, vector<8x64xf32>
    %c0_1 = arith.constant 0 : index
    %c0_2 = arith.constant 0 : index
    %1 = vector.load %arg2[%c0_1, %c0_2] : memref<64x512xf32, #tpu.memory_space<vmem>>, vector<64x512xf32>
    %cst = arith.constant dense<0.000000e+00> : vector<8x512xf32>
    %2 = tpu.matmul %0, %1, %cst {dimension_numbers = #tpu.dot_dimension_numbers<[1], [0], [0], [1], [0, 0, 1, 1], [], []>} : vector<8x64xf32>, vector<64x512xf32>, vector<8x512xf32> -> vector<8x512xf32>
    %c0_3 = arith.constant 0 : index
    %c0_4 = arith.constant 0 : index
    %3 = vector.load %arg3[%c0_3, %c0_4] : memref<1x512xf32, #tpu.memory_space<vmem>>, vector<1x512xf32>
    %4 = vector.broadcast %3 : vector<1x512xf32> to vector<8x512xf32>
    %5 = arith.addf %2, %4 : vector<8x512xf32>
    %6 = arith.mulf %5, %5 : vector<8x512xf32>
    %c0_5 = arith.constant 0 : index
    %c0_6 = arith.constant 0 : index
    %7 = vector.load %arg4[%c0_5, %c0_6] : memref<512x16xf32, #tpu.memory_space<vmem>>, vector<512x16xf32>
    %cst_7 = arith.constant dense<0.000000e+00> : vector<8x16xf32>
    %8 = tpu.matmul %6, %7, %cst_7 {dimension_numbers = #tpu.dot_dimension_numbers<[1], [0], [0], [1], [0, 0, 1, 1], [], []>} : vector<8x512xf32>, vector<512x16xf32>, vector<8x16xf32> -> vector<8x16xf32>
    %cst_8 = arith.constant 9.99999993E-9 : f32
    %9 = vector.broadcast %cst_8 : f32 to vector<8x16xf32>
    %10 = arith.addf %8, %9 : vector<8x16xf32>
    %11 = math.rsqrt %10 : vector<8x16xf32>
    %c0_9 = arith.constant 0 : index
    %c0_10 = arith.constant 0 : index
    %12 = vector.load %arg5[%c0_9, %c0_10] : memref<16x512xf32, #tpu.memory_space<vmem>>, vector<16x512xf32>
    %cst_11 = arith.constant dense<0.000000e+00> : vector<8x512xf32>
    %13 = tpu.matmul %11, %12, %cst_11 {dimension_numbers = #tpu.dot_dimension_numbers<[1], [0], [0], [1], [0, 0, 1, 1], [], []>} : vector<8x16xf32>, vector<16x512xf32>, vector<8x512xf32> -> vector<8x512xf32>
    %14 = arith.mulf %5, %13 : vector<8x512xf32>
    %cst_12 = arith.constant 0.000000e+00 : f32
    %15 = vector.broadcast %cst_12 : f32 to vector<8x512xf32>
    %16 = arith.cmpf oge, %14, %15 : vector<8x512xf32>
    %cst_13 = arith.constant 2.000000e-01 : f32
    %17 = vector.broadcast %cst_13 : f32 to vector<8x512xf32>
    %18 = arith.mulf %17, %14 : vector<8x512xf32>
    %19 = arith.select %16, %14, %18 : vector<8x512xi1>, vector<8x512xf32>
    %c0_14 = arith.constant 0 : index
    %c0_15 = arith.constant 0 : index
    %20 = vector.load %arg6[%c0_14, %c0_15] : memref<512x32xf32, #tpu.memory_space<vmem>>, vector<512x32xf32>
    %cst_16 = arith.constant dense<0.000000e+00> : vector<8x32xf32>
    %21 = tpu.matmul %19, %20, %cst_16 {dimension_numbers = #tpu.dot_dimension_numbers<[1], [0], [0], [1], [0, 0, 1, 1], [], []>} : vector<8x512xf32>, vector<512x32xf32>, vector<8x32xf32> -> vector<8x32xf32>
    %c0_17 = arith.constant 0 : index
    %c0_18 = arith.constant 0 : index
    %22 = vector.load %arg7[%c0_17, %c0_18] : memref<1x32xf32, #tpu.memory_space<vmem>>, vector<1x32xf32>
    %23 = vector.broadcast %22 : vector<1x32xf32> to vector<8x32xf32>
    %24 = arith.addf %21, %23 : vector<8x32xf32>
    %25 = arith.mulf %24, %24 : vector<8x32xf32>
    %cst_19 = arith.constant dense<0.000000e+00> : vector<8xf32>
    %26 = vector.multi_reduction <add>, %25, %cst_19 [1] : vector<8x32xf32> to vector<8xf32>
    %27 = vector.shape_cast %26 : vector<8xf32> to vector<8x1xf32>
    %cst_20 = arith.constant 3.200000e+01 : f32
    %28 = vector.broadcast %cst_20 : f32 to vector<8x1xf32>
    %29 = arith.divf %27, %28 : vector<8x1xf32>
    %cst_21 = arith.constant 9.99999993E-9 : f32
    %30 = vector.broadcast %cst_21 : f32 to vector<8x1xf32>
    %31 = arith.addf %29, %30 : vector<8x1xf32>
    %32 = math.rsqrt %31 : vector<8x1xf32>
    %33 = vector.broadcast %32 : vector<8x1xf32> to vector<8x32xf32>
    %34 = arith.mulf %24, %33 : vector<8x32xf32>
    %cst_22 = arith.constant 0.000000e+00 : f32
    %35 = vector.broadcast %cst_22 : f32 to vector<8x32xf32>
    %36 = arith.cmpf oge, %34, %35 : vector<8x32xf32>
    %cst_23 = arith.constant 2.000000e-01 : f32
    %37 = vector.broadcast %cst_23 : f32 to vector<8x32xf32>
    %38 = arith.mulf %37, %34 : vector<8x32xf32>
    %39 = arith.select %36, %34, %38 : vector<8x32xi1>, vector<8x32xf32>
    %c0_24 = arith.constant 0 : index
    %c0_25 = arith.constant 0 : index
    %40 = vector.load %arg8[%c0_24, %c0_25] : memref<1x32xf32, #tpu.memory_space<vmem>>, vector<1x32xf32>
    %41 = vector.broadcast %40 : vector<1x32xf32> to vector<8x32xf32>
    %42 = arith.mulf %39, %41 : vector<8x32xf32>
    %cst_26 = arith.constant dense<0.000000e+00> : vector<8xf32>
    %43 = vector.multi_reduction <add>, %42, %cst_26 [1] : vector<8x32xf32> to vector<8xf32>
    %44 = vector.shape_cast %43 : vector<8xf32> to vector<8x1xf32>
    %c0_27 = arith.constant 0 : index
    %c0_28 = arith.constant 0 : index
    %45 = vector.load %arg9[%c0_27, %c0_28] : memref<1x1xf32, #tpu.memory_space<vmem>>, vector<1x1xf32>
    %46 = vector.broadcast %45 : vector<1x1xf32> to vector<8x1xf32>
    %47 = arith.addf %44, %46 : vector<8x1xf32>
    %c0_29 = arith.constant 0 : index
    %c0_30 = arith.constant 0 : index
    %48 = vector.load %arg10[%c0_29, %c0_30] : memref<8x1xf32, #tpu.memory_space<vmem>>, vector<8x1xf32>
    tpu.vector_store %arg10[%c0_29, %c0_30], %47 {strides = array<i32>} : memref<8x1xf32, #tpu.memory_space<vmem>>, vector<8x1xf32>,
    return
  }
  func.func @transform_0(%arg0: i32) -> (i32, i32) {
    %c0_i32 = arith.constant 0 : i32
    %c0_i32_0 = arith.constant 0 : i32
    return %arg0, %c0_i32 : i32, i32
  }
  func.func @transform_1(%arg0: i32) -> (i32, i32) {
    %c0_i32 = arith.constant 0 : i32
    %c0_i32_0 = arith.constant 0 : i32
    %c0_i32_1 = arith.constant 0 : i32
    return %c0_i32, %c0_i32_0 : i32, i32
  }
  func.func @transform_2(%arg0: i32) -> (i32, i32) {
    %c0_i32 = arith.constant 0 : i32
    %c0_i32_0 = arith.constant 0 : i32
    %c0_i32_1 = arith.constant 0 : i32
    return %c0_i32, %c0_i32_0 : i32, i32
  }
  func.func @transform_3(%arg0: i32) -> (i32, i32) {
    %c0_i32 = arith.constant 0 : i32
    %c0_i32_0 = arith.constant 0 : i32
    %c0_i32_1 = arith.constant 0 : i32
    return %c0_i32, %c0_i32_0 : i32, i32
  }
  func.func @transform_4(%arg0: i32) -> (i32, i32) {
    %c0_i32 = arith.constant 0 : i32
    %c0_i32_0 = arith.constant 0 : i32
    %c0_i32_1 = arith.constant 0 : i32
    return %c0_i32, %c0_i32_0 : i32, i32
  }
  func.func @transform_5(%arg0: i32) -> (i32, i32) {
    %c0_i32 = arith.constant 0 : i32
    %c0_i32_0 = arith.constant 0 : i32
    %c0_i32_1 = arith.constant 0 : i32
    return %c0_i32, %c0_i32_0 : i32, i32
  }
  func.func @transform_6(%arg0: i32) -> (i32, i32) {
    %c0_i32 = arith.constant 0 : i32
    %c0_i32_0 = arith.constant 0 : i32
    %c0_i32_1 = arith.constant 0 : i32
    return %c0_i32, %c0_i32_0 : i32, i32
  }
  func.func @transform_7(%arg0: i32) -> (i32, i32) {
    %c0_i32 = arith.constant 0 : i32
    %c0_i32_0 = arith.constant 0 : i32
    %c0_i32_1 = arith.constant 0 : i32
    return %c0_i32, %c0_i32_0 : i32, i32
  }
  func.func @transform_8(%arg0: i32) -> (i32, i32) {
    %c0_i32 = arith.constant 0 : i32
    %c0_i32_0 = arith.constant 0 : i32
    %c0_i32_1 = arith.constant 0 : i32
    return %c0_i32, %c0_i32_0 : i32, i32
  }
  func.func @transform_9(%arg0: i32) -> (i32, i32) {
    %c0_i32 = arith.constant 0 : i32
    %c0_i32_0 = arith.constant 0 : i32
    return %arg0, %c0_i32 : i32, i32
  }
}

</mosaic_0001>

<llo_original>
// kernel: conditional_discriminator_wgangp_step0.1
$region0: #{conditional_discriminator_wgangp_step0.1}
  #allocation0 [shape = 'u32[]', space=smem, size = 0x4, offset = 0x4, fixed_abs, tag = 'smem constant byte address 0x4 - core index']
  #allocation1 [shape = 'u32[72,128]{1,0:T(1,128)}', space=vmem, size = 0x9000, scoped, tag = 'internal scratch']
  #allocation2 [shape = 'f32[1,1]{1,0:T(1,128)S(1)}', space=vmem, size = 0x200, scoped, tag = 'scoped memory for conditional_discriminator_wgangp_step0.1']
  %s0 = inlined_call_operand.vmem [shape: f32[8,64], index: 0, kind: input, shape index: {}]
  %s1 = inlined_call_operand.vmem [shape: f32[64,512], index: 1, kind: input, shape index: {}]
  %s2 = inlined_call_operand.vmem [shape: f32[1,512], index: 2, kind: input, shape index: {}]
  %s3 = inlined_call_operand.vmem [shape: f32[512,16], index: 3, kind: input, shape index: {}]
  %s4 = inlined_call_operand.vmem [shape: f32[16,512], index: 4, kind: input, shape index: {}]
  %s5 = inlined_call_operand.vmem [shape: f32[512,32], index: 5, kind: input, shape index: {}]
  %s6 = inlined_call_operand.vmem [shape: f32[1,32], index: 6, kind: input, shape index: {}]
  %s7 = inlined_call_operand.vmem [shape: f32[1,32], index: 7, kind: input, shape index: {}]
  %s8 = inlined_call_operand.<no memory space> [shape: f32[1,1], index: 8, kind: input, shape index: {}]
  %s9 = inlined_call_operand.vmem [shape: f32[8,1], index: 9, kind: output, shape index: {}]
  %s10 = sld [smem:[#allocation0]]
  $region46: #{conditional_discriminator_wgangp_step0.1} parent=0
    _
  %s12 = ssub.s32 1, %s10
  %s13 = scalar_select 0, %s12, %s10
  %v14 = vstv %s8
  %15 = vst [vmem:[#allocation2] sm:$0x1] %v14
  // Predicated region
  $region2: #{conditional_discriminator_wgangp_step0.1} parent=0 // pred_check
    _
  $region3: #{conditional_discriminator_wgangp_step0.1} parent=0 // pred_check_branch
    %17 = sbr.rel (0) target = $region5
  $region4: #{conditional_discriminator_wgangp_step0.1} parent=0 // pred_region
    _
  $region5: #{conditional_discriminator_wgangp_step0.1} parent=0 // pred_fallthru
    _
  // Predicated region
  $region6: #{conditional_discriminator_wgangp_step0.1} parent=0 // pred_check
    _
  $region7: #{conditional_discriminator_wgangp_step0.1} parent=0 // pred_check_branch
    %19 = sbr.rel (0) target = $region9
  $region8: #{conditional_discriminator_wgangp_step0.1} parent=0 // pred_region
    _
  $region9: #{conditional_discriminator_wgangp_step0.1} parent=0 // pred_fallthru
    _
  // Predicated region
  $region10: #{conditional_discriminator_wgangp_step0.1} parent=0 // pred_check
    _
  $region11: #{conditional_discriminator_wgangp_step0.1} parent=0 // pred_check_branch
    %21 = sbr.rel (0) target = $region13
  $region12: #{conditional_discriminator_wgangp_step0.1} parent=0 // pred_region
    _
  $region13: #{conditional_discriminator_wgangp_step0.1} parent=0 // pred_fallthru
    _
  // Predicated region
  $region14: #{conditional_discriminator_wgangp_step0.1} parent=0 // pred_check
    _
  $region15: #{conditional_discriminator_wgangp_step0.1} parent=0 // pred_check_branch
    %23 = sbr.rel (0) target = $region17
  $region16: #{conditional_discriminator_wgangp_step0.1} parent=0 // pred_region
    _
  $region17: #{conditional_discriminator_wgangp_step0.1} parent=0 // pred_fallthru
    _
  // Predicated region
  $region18: #{conditional_discriminator_wgangp_step0.1} parent=0 // pred_check
    _
  $region19: #{conditional_discriminator_wgangp_step0.1} parent=0 // pred_check_branch
    %25 = sbr.rel (0) target = $region21
  $region20: #{conditional_discriminator_wgangp_step0.1} parent=0 // pred_region
    _
  $region21: #{conditional_discriminator_wgangp_step0.1} parent=0 // pred_fallthru
    _
  // Predicated region
  $region22: #{conditional_discriminator_wgangp_step0.1} parent=0 // pred_check
    _
  $region23: #{conditional_discriminator_wgangp_step0.1} parent=0 // pred_check_branch
    %27 = sbr.rel (0) target = $region25
  $region24: #{conditional_discriminator_wgangp_step0.1} parent=0 // pred_region
    _
  $region25: #{conditional_discriminator_wgangp_step0.1} parent=0 // pred_fallthru
    _
  // Predicated region
  $region26: #{conditional_discriminator_wgangp_step0.1} parent=0 // pred_check
    _
  $region27: #{conditional_discriminator_wgangp_step0.1} parent=0 // pred_check_branch
    %29 = sbr.rel (0) target = $region29
  $region28: #{conditional_discriminator_wgangp_step0.1} parent=0 // pred_region
    _
  $region29: #{conditional_discriminator_wgangp_step0.1} parent=0 // pred_fallthru
    _
  // Predicated region
  $region30: #{conditional_discriminator_wgangp_step0.1} parent=0 // pred_check
    _
  $region31: #{conditional_discriminator_wgangp_step0.1} parent=0 // pred_check_branch
    %31 = sbr.rel (0) target = $region33
  $region32: #{conditional_discriminator_wgangp_step0.1} parent=0 // pred_region
    _
  $region33: #{conditional_discriminator_wgangp_step0.1} parent=0 // pred_fallthru
    _
  // Predicated region
  $region34: #{conditional_discriminator_wgangp_step0.1} parent=0 // pred_check
    _
  $region35: #{conditional_discriminator_wgangp_step0.1} parent=0 // pred_check_branch
    %33 = sbr.rel (0) target = $region37
  $region36: #{conditional_discriminator_wgangp_step0.1} parent=0 // pred_region
    _
  $region37: #{conditional_discriminator_wgangp_step0.1} parent=0 // pred_fallthru
    _
  %v34 = vld [vmem:[%s0] sm:$0xff]
  %v35 = vld [vmem:[%s1] sm:$0xff]
  %v36 = vld [vmem:[%s1 + $0x8] sm:$0xff]
  %v37 = vld [vmem:[%s1 + $0x10] sm:$0xff]
  %v38 = vld [vmem:[%s1 + $0x18] sm:$0xff]
  %v39 = vld [vmem:[%s1 + $0x20] sm:$0xff]
  %v40 = vld [vmem:[%s1 + $0x28] sm:$0xff]
  %v41 = vld [vmem:[%s1 + $0x30] sm:$0xff]
  %v42 = vld [vmem:[%s1 + $0x38] sm:$0xff]
  %v43 = vld [vmem:[%s1 + $0x40] sm:$0xff]
  %v44 = vld [vmem:[%s1 + $0x48] sm:$0xff]
  %v45 = vld [vmem:[%s1 + $0x50] sm:$0xff]
  %v46 = vld [vmem:[%s1 + $0x58] sm:$0xff]
  %v47 = vld [vmem:[%s1 + $0x60] sm:$0xff]
  %v48 = vld [vmem:[%s1 + $0x68] sm:$0xff]
  %v49 = vld [vmem:[%s1 + $0x70] sm:$0xff]
  %v50 = vld [vmem:[%s1 + $0x78] sm:$0xff]
  %v51 = vld [vmem:[%s1 + $0x80] sm:$0xff]
  %v52 = vld [vmem:[%s1 + $0x88] sm:$0xff]
  %v53 = vld [vmem:[%s1 + $0x90] sm:$0xff]
  %v54 = vld [vmem:[%s1 + $0x98] sm:$0xff]
  %v55 = vld [vmem:[%s1 + $0xa0] sm:$0xff]
  %v56 = vld [vmem:[%s1 + $0xa8] sm:$0xff]
  %v57 = vld [vmem:[%s1 + $0xb0] sm:$0xff]
  %v58 = vld [vmem:[%s1 + $0xb8] sm:$0xff]
  %v59 = vld [vmem:[%s1 + $0xc0] sm:$0xff]
  %v60 = vld [vmem:[%s1 + $0xc8] sm:$0xff]
  %v61 = vld [vmem:[%s1 + $0xd0] sm:$0xff]
  %v62 = vld [vmem:[%s1 + $0xd8] sm:$0xff]
  %v63 = vld [vmem:[%s1 + $0xe0] sm:$0xff]
  %v64 = vld [vmem:[%s1 + $0xe8] sm:$0xff]
  %v65 = vld [vmem:[%s1 + $0xf0] sm:$0xff]
  %v66 = vld [vmem:[%s1 + $0xf8] sm:$0xff]
  %v67 = vld [vmem:[%s2] sm:$0xf]
  %v69 = vperm.slane %v67, 0
  %v70 = vperm.slane %v67, 1
  %v71 = vperm.slane %v67, 2
  %v72 = vperm.slane %v67, 3
  %vm77 = vcmask 523264
  %v79 = vsel %vm77, %v34, 0
  %81 = vmatpush.msra.mxu0 0.0
  %82 = vmatpush.msra.mxu0 0.0
  %83 = vmatpush.msra.mxu0 0.0
  %84 = vmatpush.msra.mxu0 0.0
  %85 = vmatpush.msra.mxu0 0.0
  %86 = vmatpush.msra.mxu0 0.0
  %87 = vmatpush.msra.mxu0 0.0
  %88 = vmatpush.msra.mxu0 0.0
  %89 = vmatpush.msra.mxu0 %v63
  %90 = vmatpush.msra.mxu0 %v59
  %91 = vmatpush.msra.mxu0 %v55
  %92 = vmatpush.msra.mxu0 %v51
  %93 = vmatpush.msra.mxu0 %v47
  %94 = vmatpush.msra.mxu0 %v43
  %95 = vmatpush.msra.mxu0 %v39
  %96 = vmatpush.msra.mxu0 %v35
  %97 = vmatmul.f32.gmra.mxu0 %v79
  %v98 = vpop.f32.mrf.mxu0
  %v99 = vadd.f32 %v69, %v98
  %100 = vdwg.mxu0
  %101 = vmatpush.msra.mxu0 0.0
  %102 = vmatpush.msra.mxu0 0.0
  %103 = vmatpush.msra.mxu0 0.0
  %104 = vmatpush.msra.mxu0 0.0
  %105 = vmatpush.msra.mxu0 0.0
  %106 = vmatpush.msra.mxu0 0.0
  %107 = vmatpush.msra.mxu0 0.0
  %108 = vmatpush.msra.mxu0 0.0
  %109 = vmatpush.msra.mxu0 %v64
  %110 = vmatpush.msra.mxu0 %v60
  %111 = vmatpush.msra.mxu0 %v56
  %112 = vmatpush.msra.mxu0 %v52
  %113 = vmatpush.msra.mxu0 %v48
  %114 = vmatpush.msra.mxu0 %v44
  %115 = vmatpush.msra.mxu0 %v40
  %116 = vmatpush.msra.mxu0 %v36
  %117 = vmatmul.f32.gmra.mxu0 %v79
  %v118 = vpop.f32.mrf.mxu0
  %v119 = vadd.f32 %v70, %v118
  %120 = vdwg.mxu0
  %121 = vmatpush.msra.mxu0 0.0
  %122 = vmatpush.msra.mxu0 0.0
  %123 = vmatpush.msra.mxu0 0.0
  %124 = vmatpush.msra.mxu0 0.0
  %125 = vmatpush.msra.mxu0 0.0
  %126 = vmatpush.msra.mxu0 0.0
  %127 = vmatpush.msra.mxu0 0.0
  %128 = vmatpush.msra.mxu0 0.0
  %129 = vmatpush.msra.mxu0 %v65
  %130 = vmatpush.msra.mxu0 %v61
  %131 = vmatpush.msra.mxu0 %v57
  %132 = vmatpush.msra.mxu0 %v53
  %133 = vmatpush.msra.mxu0 %v49
  %134 = vmatpush.msra.mxu0 %v45
  %135 = vmatpush.msra.mxu0 %v41
  %136 = vmatpush.msra.mxu0 %v37
  %137 = vmatmul.f32.gmra.mxu0 %v79
  %v138 = vpop.f32.mrf.mxu0
  %v139 = vadd.f32 %v71, %v138
  %140 = vdwg.mxu0
  %141 = vmatpush.msra.mxu0 0.0
  %142 = vmatpush.msra.mxu0 0.0
  %143 = vmatpush.msra.mxu0 0.0
  %144 = vmatpush.msra.mxu0 0.0
  %145 = vmatpush.msra.mxu0 0.0
  %146 = vmatpush.msra.mxu0 0.0
  %147 = vmatpush.msra.mxu0 0.0
  %148 = vmatpush.msra.mxu0 0.0
  %149 = vmatpush.msra.mxu0 %v66
  %150 = vmatpush.msra.mxu0 %v62
  %151 = vmatpush.msra.mxu0 %v58
  %152 = vmatpush.msra.mxu0 %v54
  %153 = vmatpush.msra.mxu0 %v50
  %154 = vmatpush.msra.mxu0 %v46
  %155 = vmatpush.msra.mxu0 %v42
  %156 = vmatpush.msra.mxu0 %v38
  %157 = vmatmul.f32.gmra.mxu0 %v79
  %v158 = vpop.f32.mrf.mxu0
  %v159 = vadd.f32 %v72, %v158
  %160 = vdwg.mxu0
  %v161 = vmul.f32 %v99, %v99
  %v162 = vmul.f32 %v119, %v119
  %v163 = vmul.f32 %v139, %v139
  %v164 = vmul.f32 %v159, %v159
  %v165 = vld [vmem:[%s3] sm:$0xff]
  %v166 = vld [vmem:[%s3 + $0x8] sm:$0xff]
  %v167 = vld [vmem:[%s3 + $0x10] sm:$0xff]
  %v168 = vld [vmem:[%s3 + $0x18] sm:$0xff]
  %v169 = vld [vmem:[%s3 + $0x20] sm:$0xff]
  %v170 = vld [vmem:[%s3 + $0x28] sm:$0xff]
  %v171 = vld [vmem:[%s3 + $0x30] sm:$0xff]
  %v172 = vld [vmem:[%s3 + $0x38] sm:$0xff]
  %v173 = vld [vmem:[%s3 + $0x40] sm:$0xff]
  %v174 = vld [vmem:[%s3 + $0x48] sm:$0xff]
  %v175 = vld [vmem:[%s3 + $0x50] sm:$0xff]
  %v176 = vld [vmem:[%s3 + $0x58] sm:$0xff]
  %v177 = vld [vmem:[%s3 + $0x60] sm:$0xff]
  %v178 = vld [vmem:[%s3 + $0x68] sm:$0xff]
  %v179 = vld [vmem:[%s3 + $0x70] sm:$0xff]
  %v180 = vld [vmem:[%s3 + $0x78] sm:$0xff]
  %v181 = vld [vmem:[%s3 + $0x80] sm:$0xff]
  %v182 = vld [vmem:[%s3 + $0x88] sm:$0xff]
  %v183 = vld [vmem:[%s3 + $0x90] sm:$0xff]
  %v184 = vld [vmem:[%s3 + $0x98] sm:$0xff]
  %v185 = vld [vmem:[%s3 + $0xa0] sm:$0xff]
  %v186 = vld [vmem:[%s3 + $0xa8] sm:$0xff]
  %v187 = vld [vmem:[%s3 + $0xb0] sm:$0xff]
  %v188 = vld [vmem:[%s3 + $0xb8] sm:$0xff]
  %v189 = vld [vmem:[%s3 + $0xc0] sm:$0xff]
  %v190 = vld [vmem:[%s3 + $0xc8] sm:$0xff]
  %v191 = vld [vmem:[%s3 + $0xd0] sm:$0xff]
  %v192 = vld [vmem:[%s3 + $0xd8] sm:$0xff]
  %v193 = vld [vmem:[%s3 + $0xe0] sm:$0xff]
  %v194 = vld [vmem:[%s3 + $0xe8] sm:$0xff]
  %v195 = vld [vmem:[%s3 + $0xf0] sm:$0xff]
  %v196 = vld [vmem:[%s3 + $0xf8] sm:$0xff]
  %v197 = vld [vmem:[%s3 + $0x100] sm:$0xff]
  %v198 = vld [vmem:[%s3 + $0x108] sm:$0xff]
  %v199 = vld [vmem:[%s3 + $0x110] sm:$0xff]
  %v200 = vld [vmem:[%s3 + $0x118] sm:$0xff]
  %v201 = vld [vmem:[%s3 + $0x120] sm:$0xff]
  %v202 = vld [vmem:[%s3 + $0x128] sm:$0xff]
  %v203 = vld [vmem:[%s3 + $0x130] sm:$0xff]
  %v204 = vld [vmem:[%s3 + $0x138] sm:$0xff]
  %v205 = vld [vmem:[%s3 + $0x140] sm:$0xff]
  %v206 = vld [vmem:[%s3 + $0x148] sm:$0xff]
  %v207 = vld [vmem:[%s3 + $0x150] sm:$0xff]
  %v208 = vld [vmem:[%s3 + $0x158] sm:$0xff]
  %v209 = vld [vmem:[%s3 + $0x160] sm:$0xff]
  %v210 = vld [vmem:[%s3 + $0x168] sm:$0xff]
  %v211 = vld [vmem:[%s3 + $0x170] sm:$0xff]
  %v212 = vld [vmem:[%s3 + $0x178] sm:$0xff]
  %v213 = vld [vmem:[%s3 + $0x180] sm:$0xff]
  %v214 = vld [vmem:[%s3 + $0x188] sm:$0xff]
  %v215 = vld [vmem:[%s3 + $0x190] sm:$0xff]
  %v216 = vld [vmem:[%s3 + $0x198] sm:$0xff]
  %v217 = vld [vmem:[%s3 + $0x1a0] sm:$0xff]
  %v218 = vld [vmem:[%s3 + $0x1a8] sm:$0xff]
  %v219 = vld [vmem:[%s3 + $0x1b0] sm:$0xff]
  %v220 = vld [vmem:[%s3 + $0x1b8] sm:$0xff]
  %v221 = vld [vmem:[%s3 + $0x1c0] sm:$0xff]
  %v222 = vld [vmem:[%s3 + $0x1c8] sm:$0xff]
  %v223 = vld [vmem:[%s3 + $0x1d0] sm:$0xff]
  %v224 = vld [vmem:[%s3 + $0x1d8] sm:$0xff]
  %v225 = vld [vmem:[%s3 + $0x1e0] sm:$0xff]
  %v226 = vld [vmem:[%s3 + $0x1e8] sm:$0xff]
  %v227 = vld [vmem:[%s3 + $0x1f0] sm:$0xff]
  %v228 = vld [vmem:[%s3 + $0x1f8] sm:$0xff]
  %229 = vmatpush.msra.mxu0 %v180
  %230 = vmatpush.msra.mxu0 %v179
  %231 = vmatpush.msra.mxu0 %v178
  %232 = vmatpush.msra.mxu0 %v177
  %233 = vmatpush.msra.mxu0 %v176
  %234 = vmatpush.msra.mxu0 %v175
  %235 = vmatpush.msra.mxu0 %v174
  %236 = vmatpush.msra.mxu0 %v173
  %237 = vmatpush.msra.mxu0 %v172
  %238 = vmatpush.msra.mxu0 %v171
  %239 = vmatpush.msra.mxu0 %v170
  %240 = vmatpush.msra.mxu0 %v169
  %241 = vmatpush.msra.mxu0 %v168
  %242 = vmatpush.msra.mxu0 %v167
  %243 = vmatpush.msra.mxu0 %v166
  %244 = vmatpush.msra.mxu0 %v165
  %245 = vmatmul.f32.gmra.mxu0 %v161
  %v246 = vpop.f32.mrf.mxu0
  %v247 = vadd.f32 1e-08, %v246
  %248 = vdwg.mxu0
  %249 = vmatpush.msra.mxu0 %v196
  %250 = vmatpush.msra.mxu0 %v195
  %251 = vmatpush.msra.mxu0 %v194
  %252 = vmatpush.msra.mxu0 %v193
  %253 = vmatpush.msra.mxu0 %v192
  %254 = vmatpush.msra.mxu0 %v191
  %255 = vmatpush.msra.mxu0 %v190
  %256 = vmatpush.msra.mxu0 %v189
  %257 = vmatpush.msra.mxu0 %v188
  %258 = vmatpush.msra.mxu0 %v187
  %259 = vmatpush.msra.mxu0 %v186
  %260 = vmatpush.msra.mxu0 %v185
  %261 = vmatpush.msra.mxu0 %v184
  %262 = vmatpush.msra.mxu0 %v183
  %263 = vmatpush.msra.mxu0 %v182
  %264 = vmatpush.msra.mxu0 %v181
  %265 = vmatmul.f32.gmra.mxu0 %v162
  %v266 = vpop.f32.mrf.mxu0
  %v267 = vadd.f32 %v247, %v266
  %268 = vdwg.mxu0
  %269 = vmatpush.msra.mxu0 %v212
  %270 = vmatpush.msra.mxu0 %v211
  %271 = vmatpush.msra.mxu0 %v210
  %272 = vmatpush.msra.mxu0 %v209
  %273 = vmatpush.msra.mxu0 %v208
  %274 = vmatpush.msra.mxu0 %v207
  %275 = vmatpush.msra.mxu0 %v206
  %276 = vmatpush.msra.mxu0 %v205
  %277 = vmatpush.msra.mxu0 %v204
  %278 = vmatpush.msra.mxu0 %v203
  %279 = vmatpush.msra.mxu0 %v202
  %280 = vmatpush.msra.mxu0 %v201
  %281 = vmatpush.msra.mxu0 %v200
  %282 = vmatpush.msra.mxu0 %v199
  %283 = vmatpush.msra.mxu0 %v198
  %284 = vmatpush.msra.mxu0 %v197
  %285 = vmatmul.f32.gmra.mxu0 %v163
  %v286 = vpop.f32.mrf.mxu0
  %v287 = vadd.f32 %v267, %v286
  %288 = vdwg.mxu0
  %289 = vmatpush.msra.mxu0 %v228
  %290 = vmatpush.msra.mxu0 %v227
  %291 = vmatpush.msra.mxu0 %v226
  %292 = vmatpush.msra.mxu0 %v225
  %293 = vmatpush.msra.mxu0 %v224
  %294 = vmatpush.msra.mxu0 %v223
  %295 = vmatpush.msra.mxu0 %v222
  %296 = vmatpush.msra.mxu0 %v221
  %297 = vmatpush.msra.mxu0 %v220
  %298 = vmatpush.msra.mxu0 %v219
  %299 = vmatpush.msra.mxu0 %v218
  %300 = vmatpush.msra.mxu0 %v217
  %301 = vmatpush.msra.mxu0 %v216
  %302 = vmatpush.msra.mxu0 %v215
  %303 = vmatpush.msra.mxu0 %v214
  %304 = vmatpush.msra.mxu0 %v213
  %305 = vmatmul.f32.gmra.mxu0 %v164
  %v306 = vpop.f32.mrf.mxu0
  %v307 = vadd.f32 %v287, %v306
  %308 = vdwg.mxu0
  %v309 = vrsqrt.pop %v307
  %v310 = vmul.f32 %v309, %v307
  %v311 = vmul.f32 %v310, %v309
  %v312 = vmul.f32 0.5, %v311
  %v313 = vsub.f32 1.5, %v312
  %v314 = vmul.f32 %v309, %v313
  %vm315 = vweird.f32 %v307
  %vm316 = vweird.f32 %v309
  %vm317 = vmor %vm315, %vm316
  %v318 = vsel %vm317, %v309, %v314
  %v319 = vld [vmem:[%s4] sm:$0xff]
  %v320 = vld [vmem:[%s4 + $0x8] sm:$0xff]
  %v321 = vld [vmem:[%s4 + $0x10] sm:$0xff]
  %v322 = vld [vmem:[%s4 + $0x18] sm:$0xff]
  %v323 = vld [vmem:[%s4 + $0x20] sm:$0xff]
  %v324 = vld [vmem:[%s4 + $0x28] sm:$0xff]
  %v325 = vld [vmem:[%s4 + $0x30] sm:$0xff]
  %v326 = vld [vmem:[%s4 + $0x38] sm:$0xff]
  %vm327 = vcmask 130048
  %v329 = vsel %vm327, %v318, 0
  %331 = vmatpush.msra.mxu0 0.0
  %332 = vmatpush.msra.mxu0 0.0
  %333 = vmatpush.msra.mxu0 0.0
  %334 = vmatpush.msra.mxu0 0.0
  %335 = vmatpush.msra.mxu0 0.0
  %336 = vmatpush.msra.mxu0 0.0
  %337 = vmatpush.msra.mxu0 0.0
  %338 = vmatpush.msra.mxu0 0.0
  %339 = vmatpush.msra.mxu0 0.0
  %340 = vmatpush.msra.mxu0 0.0
  %341 = vmatpush.msra.mxu0 0.0
  %342 = vmatpush.msra.mxu0 0.0
  %343 = vmatpush.msra.mxu0 0.0
  %344 = vmatpush.msra.mxu0 0.0
  %345 = vmatpush.msra.mxu0 %v323
  %346 = vmatpush.msra.mxu0 %v319
  %347 = vmatmul.f32.gmra.mxu0 %v329
  %v348 = vpop.f32.mrf.mxu0
  %v349 = vadd.f32 0.0, %v348
  %350 = vdwg.mxu0
  %351 = vmatpush.msra.mxu0 0.0
  %352 = vmatpush.msra.mxu0 0.0
  %353 = vmatpush.msra.mxu0 0.0
  %354 = vmatpush.msra.mxu0 0.0
  %355 = vmatpush.msra.mxu0 0.0
  %356 = vmatpush.msra.mxu0 0.0
  %357 = vmatpush.msra.mxu0 0.0
  %358 = vmatpush.msra.mxu0 0.0
  %359 = vmatpush.msra.mxu0 0.0
  %360 = vmatpush.msra.mxu0 0.0
  %361 = vmatpush.msra.mxu0 0.0
  %362 = vmatpush.msra.mxu0 0.0
  %363 = vmatpush.msra.mxu0 0.0
  %364 = vmatpush.msra.mxu0 0.0
  %365 = vmatpush.msra.mxu0 %v324
  %366 = vmatpush.msra.mxu0 %v320
  %367 = vmatmul.f32.gmra.mxu0 %v329
  %v368 = vpop.f32.mrf.mxu0
  %v369 = vadd.f32 0.0, %v368
  %370 = vdwg.mxu0
  %371 = vmatpush.msra.mxu0 0.0
  %372 = vmatpush.msra.mxu0 0.0
  %373 = vmatpush.msra.mxu0 0.0
  %374 = vmatpush.msra.mxu0 0.0
  %375 = vmatpush.msra.mxu0 0.0
  %376 = vmatpush.msra.mxu0 0.0
  %377 = vmatpush.msra.mxu0 0.0
  %378 = vmatpush.msra.mxu0 0.0
  %379 = vmatpush.msra.mxu0 0.0
  %380 = vmatpush.msra.mxu0 0.0
  %381 = vmatpush.msra.mxu0 0.0
  %382 = vmatpush.msra.mxu0 0.0
  %383 = vmatpush.msra.mxu0 0.0
  %384 = vmatpush.msra.mxu0 0.0
  %385 = vmatpush.msra.mxu0 %v325
  %386 = vmatpush.msra.mxu0 %v321
  %387 = vmatmul.f32.gmra.mxu0 %v329
  %v388 = vpop.f32.mrf.mxu0
  %v389 = vadd.f32 0.0, %v388
  %390 = vdwg.mxu0
  %391 = vmatpush.msra.mxu0 0.0
  %392 = vmatpush.msra.mxu0 0.0
  %393 = vmatpush.msra.mxu0 0.0
  %394 = vmatpush.msra.mxu0 0.0
  %395 = vmatpush.msra.mxu0 0.0
  %396 = vmatpush.msra.mxu0 0.0
  %397 = vmatpush.msra.mxu0 0.0
  %398 = vmatpush.msra.mxu0 0.0
  %399 = vmatpush.msra.mxu0 0.0
  %400 = vmatpush.msra.mxu0 0.0
  %401 = vmatpush.msra.mxu0 0.0
  %402 = vmatpush.msra.mxu0 0.0
  %403 = vmatpush.msra.mxu0 0.0
  %404 = vmatpush.msra.mxu0 0.0
  %405 = vmatpush.msra.mxu0 %v326
  %406 = vmatpush.msra.mxu0 %v322
  %407 = vmatmul.f32.gmra.mxu0 %v329
  %v408 = vpop.f32.mrf.mxu0
  %v409 = vadd.f32 0.0, %v408
  %410 = vdwg.mxu0
  %v411 = vmul.f32 %v99, %v349
  %v412 = vmul.f32 %v119, %v369
  %v413 = vmul.f32 %v139, %v389
  %v414 = vmul.f32 %v159, %v409
  %vm415 = vcmp.ge.f32.partialorder %v411, 0.0
  %vm416 = vcmp.ge.f32.partialorder %v412, 0.0
  %vm417 = vcmp.ge.f32.partialorder %v413, 0.0
  %vm418 = vcmp.ge.f32.partialorder %v414, 0.0
  %v419 = vmul.f32 %v411, 0.2
  %v420 = vmul.f32 %v412, 0.2
  %v421 = vmul.f32 %v413, 0.2
  %v422 = vmul.f32 %v414, 0.2
  %v423 = vsel %vm415, %v411, %v419
  %v424 = vsel %vm416, %v412, %v420
  %v425 = vsel %vm417, %v413, %v421
  %v426 = vsel %vm418, %v414, %v422
  %v427 = vld [vmem:[%s5] sm:$0xff]
  %v428 = vld [vmem:[%s5 + $0x8] sm:$0xff]
  %v429 = vld [vmem:[%s5 + $0x10] sm:$0xff]
  %v430 = vld [vmem:[%s5 + $0x18] sm:$0xff]
  %v431 = vld [vmem:[%s5 + $0x20] sm:$0xff]
  %v432 = vld [vmem:[%s5 + $0x28] sm:$0xff]
  %v433 = vld [vmem:[%s5 + $0x30] sm:$0xff]
  %v434 = vld [vmem:[%s5 + $0x38] sm:$0xff]
  %v435 = vld [vmem:[%s5 + $0x40] sm:$0xff]
  %v436 = vld [vmem:[%s5 + $0x48] sm:$0xff]
  %v437 = vld [vmem:[%s5 + $0x50] sm:$0xff]
  %v438 = vld [vmem:[%s5 + $0x58] sm:$0xff]
  %v439 = vld [vmem:[%s5 + $0x60] sm:$0xff]
  %v440 = vld [vmem:[%s5 + $0x68] sm:$0xff]
  %v441 = vld [vmem:[%s5 + $0x70] sm:$0xff]
  %v442 = vld [vmem:[%s5 + $0x78] sm:$0xff]
  %v443 = vld [vmem:[%s5 + $0x80] sm:$0xff]
  %v444 = vld [vmem:[%s5 + $0x88] sm:$0xff]
  %v445 = vld [vmem:[%s5 + $0x90] sm:$0xff]
  %v446 = vld [vmem:[%s5 + $0x98] sm:$0xff]
  %v447 = vld [vmem:[%s5 + $0xa0] sm:$0xff]
  %v448 = vld [vmem:[%s5 + $0xa8] sm:$0xff]
  %v449 = vld [vmem:[%s5 + $0xb0] sm:$0xff]
  %v450 = vld [vmem:[%s5 + $0xb8] sm:$0xff]
  %v451 = vld [vmem:[%s5 + $0xc0] sm:$0xff]
  %v452 = vld [vmem:[%s5 + $0xc8] sm:$0xff]
  %v453 = vld [vmem:[%s5 + $0xd0] sm:$0xff]
  %v454 = vld [vmem:[%s5 + $0xd8] sm:$0xff]
  %v455 = vld [vmem:[%s5 + $0xe0] sm:$0xff]
  %v456 = vld [vmem:[%s5 + $0xe8] sm:$0xff]
  %v457 = vld [vmem:[%s5 + $0xf0] sm:$0xff]
  %v458 = vld [vmem:[%s5 + $0xf8] sm:$0xff]
  %v459 = vld [vmem:[%s5 + $0x100] sm:$0xff]
  %v460 = vld [vmem:[%s5 + $0x108] sm:$0xff]
  %v461 = vld [vmem:[%s5 + $0x110] sm:$0xff]
  %v462 = vld [vmem:[%s5 + $0x118] sm:$0xff]
  %v463 = vld [vmem:[%s5 + $0x120] sm:$0xff]
  %v464 = vld [vmem:[%s5 + $0x128] sm:$0xff]
  %v465 = vld [vmem:[%s5 + $0x130] sm:$0xff]
  %v466 = vld [vmem:[%s5 + $0x138] sm:$0xff]
  %v467 = vld [vmem:[%s5 + $0x140] sm:$0xff]
  %v468 = vld [vmem:[%s5 + $0x148] sm:$0xff]
  %v469 = vld [vmem:[%s5 + $0x150] sm:$0xff]
  %v470 = vld [vmem:[%s5 + $0x158] sm:$0xff]
  %v471 = vld [vmem:[%s5 + $0x160] sm:$0xff]
  %v472 = vld [vmem:[%s5 + $0x168] sm:$0xff]
  %v473 = vld [vmem:[%s5 + $0x170] sm:$0xff]
  %v474 = vld [vmem:[%s5 + $0x178] sm:$0xff]
  %v475 = vld [vmem:[%s5 + $0x180] sm:$0xff]
  %v476 = vld [vmem:[%s5 + $0x188] sm:$0xff]
  %v477 = vld [vmem:[%s5 + $0x190] sm:$0xff]
  %v478 = vld [vmem:[%s5 + $0x198] sm:$0xff]
  %v479 = vld [vmem:[%s5 + $0x1a0] sm:$0xff]
  %v480 = vld [vmem:[%s5 + $0x1a8] sm:$0xff]
  %v481 = vld [vmem:[%s5 + $0x1b0] sm:$0xff]
  %v482 = vld [vmem:[%s5 + $0x1b8] sm:$0xff]
  %v483 = vld [vmem:[%s5 + $0x1c0] sm:$0xff]
  %v484 = vld [vmem:[%s5 + $0x1c8] sm:$0xff]
  %v485 = vld [vmem:[%s5 + $0x1d0] sm:$0xff]
  %v486 = vld [vmem:[%s5 + $0x1d8] sm:$0xff]
  %v487 = vld [vmem:[%s5 + $0x1e0] sm:$0xff]
  %v488 = vld [vmem:[%s5 + $0x1e8] sm:$0xff]
  %v489 = vld [vmem:[%s5 + $0x1f0] sm:$0xff]
  %v490 = vld [vmem:[%s5 + $0x1f8] sm:$0xff]
  %v491 = vld [vmem:[%s6] sm:$0x1]
  %v493 = vperm.slane %v491, 0
  %495 = vmatpush.msra.mxu0 %v442
  %496 = vmatpush.msra.mxu0 %v441
  %497 = vmatpush.msra.mxu0 %v440
  %498 = vmatpush.msra.mxu0 %v439
  %499 = vmatpush.msra.mxu0 %v438
  %500 = vmatpush.msra.mxu0 %v437
  %501 = vmatpush.msra.mxu0 %v436
  %502 = vmatpush.msra.mxu0 %v435
  %503 = vmatpush.msra.mxu0 %v434
  %504 = vmatpush.msra.mxu0 %v433
  %505 = vmatpush.msra.mxu0 %v432
  %506 = vmatpush.msra.mxu0 %v431
  %507 = vmatpush.msra.mxu0 %v430
  %508 = vmatpush.msra.mxu0 %v429
  %509 = vmatpush.msra.mxu0 %v428
  %510 = vmatpush.msra.mxu0 %v427
  %511 = vmatmul.f32.gmra.mxu0 %v423
  %v512 = vpop.f32.mrf.mxu0
  %v513 = vadd.f32 %v493, %v512
  %514 = vdwg.mxu0
  %515 = vmatpush.msra.mxu0 %v458
  %516 = vmatpush.msra.mxu0 %v457
  %517 = vmatpush.msra.mxu0 %v456
  %518 = vmatpush.msra.mxu0 %v455
  %519 = vmatpush.msra.mxu0 %v454
  %520 = vmatpush.msra.mxu0 %v453
  %521 = vmatpush.msra.mxu0 %v452
  %522 = vmatpush.msra.mxu0 %v451
  %523 = vmatpush.msra.mxu0 %v450
  %524 = vmatpush.msra.mxu0 %v449
  %525 = vmatpush.msra.mxu0 %v448
  %526 = vmatpush.msra.mxu0 %v447
  %527 = vmatpush.msra.mxu0 %v446
  %528 = vmatpush.msra.mxu0 %v445
  %529 = vmatpush.msra.mxu0 %v444
  %530 = vmatpush.msra.mxu0 %v443
  %531 = vmatmul.f32.gmra.mxu0 %v424
  %v532 = vpop.f32.mrf.mxu0
  %v533 = vadd.f32 %v513, %v532
  %534 = vdwg.mxu0
  %535 = vmatpush.msra.mxu0 %v474
  %536 = vmatpush.msra.mxu0 %v473
  %537 = vmatpush.msra.mxu0 %v472
  %538 = vmatpush.msra.mxu0 %v471
  %539 = vmatpush.msra.mxu0 %v470
  %540 = vmatpush.msra.mxu0 %v469
  %541 = vmatpush.msra.mxu0 %v468
  %542 = vmatpush.msra.mxu0 %v467
  %543 = vmatpush.msra.mxu0 %v466
  %544 = vmatpush.msra.mxu0 %v465
  %545 = vmatpush.msra.mxu0 %v464
  %546 = vmatpush.msra.mxu0 %v463
  %547 = vmatpush.msra.mxu0 %v462
  %548 = vmatpush.msra.mxu0 %v461
  %549 = vmatpush.msra.mxu0 %v460
  %550 = vmatpush.msra.mxu0 %v459
  %551 = vmatmul.f32.gmra.mxu0 %v425
  %v552 = vpop.f32.mrf.mxu0
  %v553 = vadd.f32 %v533, %v552
  %554 = vdwg.mxu0
  %555 = vmatpush.msra.mxu0 %v490
  %556 = vmatpush.msra.mxu0 %v489
  %557 = vmatpush.msra.mxu0 %v488
  %558 = vmatpush.msra.mxu0 %v487
  %559 = vmatpush.msra.mxu0 %v486
  %560 = vmatpush.msra.mxu0 %v485
  %561 = vmatpush.msra.mxu0 %v484
  %562 = vmatpush.msra.mxu0 %v483
  %563 = vmatpush.msra.mxu0 %v482
  %564 = vmatpush.msra.mxu0 %v481
  %565 = vmatpush.msra.mxu0 %v480
  %566 = vmatpush.msra.mxu0 %v479
  %567 = vmatpush.msra.mxu0 %v478
  %568 = vmatpush.msra.mxu0 %v477
  %569 = vmatpush.msra.mxu0 %v476
  %570 = vmatpush.msra.mxu0 %v475
  %571 = vmatmul.f32.gmra.mxu0 %v426
  %v572 = vpop.f32.mrf.mxu0
  %v573 = vadd.f32 %v553, %v572
  %574 = vdwg.mxu0
  %v575 = vmul.f32 %v573, %v573
  %vm576 = vcmask 261120
  %v577 = vsel %vm576, %v575, 0.0
  %578 = vadd.xlane.f32.xlu0 %v577
  %v579 = vpop.xlane.xlu0 %578
  %v580 = vrcp.pop 32.0
  %v581 = vmul.f32 32.0, %v580
  %v582 = vsub.f32 1.0, %v581
  %v583 = vmul.f32 %v580, %v582
  %v584 = vadd.f32 %v580, %v583
  %vm585 = vweird.f32 %v580
  %v586 = vsel %vm585, %v580, %v584
  %v587 = vmul.f32 %v579, %v586
  %v588 = vadd.f32 %v587, 1e-08
  %v589 = vrsqrt.pop %v588
  %v590 = vmul.f32 %v589, %v588
  %v591 = vmul.f32 %v590, %v589
  %v592 = vmul.f32 0.5, %v591
  %v593 = vsub.f32 1.5, %v592
  %v594 = vmul.f32 %v589, %v593
  %vm595 = vweird.f32 %v588
  %vm596 = vweird.f32 %v589
  %vm597 = vmor %vm595, %vm596
  %v598 = vsel %vm597, %v589, %v594
  %v599 = vmul.f32 %v573, %v598
  %vm600 = vcmp.ge.f32.partialorder %v599, 0.0
  %v601 = vmul.f32 %v599, 0.2
  %v602 = vsel %vm600, %v599, %v601
  %v603 = vld [vmem:[%s7] sm:$0x1]
  %v605 = vperm.slane %v603, 0
  %v607 = vmul.f32 %v602, %v605
  %v608 = vsel %vm576, %v607, 0.0
  %609 = vadd.xlane.f32.xlu0 %v608
  %v610 = vpop.xlane.xlu0 %609
  %v611 = vld [vmem:[#allocation2] sm:$0x1]
  %v613 = vperm.slane %v611, 0
  %v615 = vadd.f32 %v610, %v613
  %vm616 = vcmask 7168
  %617 = vst.msk [vmem:[%s9] sm:$0xff] %vm616, %v615
  // Predicated region
  $region38: #{conditional_discriminator_wgangp_step0.1} parent=0 // pred_check
    _
  $region39: #{conditional_discriminator_wgangp_step0.1} parent=0 // pred_check_branch
    %619 = sbr.rel (0) target = $region41
  $region40: #{conditional_discriminator_wgangp_step0.1} parent=0 // pred_region
    _
  $region41: #{conditional_discriminator_wgangp_step0.1} parent=0 // pred_fallthru
    _
  // Predicated region
  $region42: #{conditional_discriminator_wgangp_step0.1} parent=0 // pred_check
    _
  $region43: #{conditional_discriminator_wgangp_step0.1} parent=0 // pred_check_branch
    %621 = sbr.rel (0) target = $region45
  $region44: #{conditional_discriminator_wgangp_step0.1} parent=0 // pred_region
    _
  $region45: #{conditional_discriminator_wgangp_step0.1} parent=0 // pred_fallthru
    _

</llo_original>
